<compile_context>
chip_gen: v7x
topology: tpu7x:2x2x1
jax: 0.10.0
libtpu: 0.0.40
codegen_flags: <defaults>
</compile_context>

<pallas_src>
import functools

import jax
import jax.numpy as jnp
from jax import lax
from jax.experimental import pallas as pl
from jax.experimental.pallas import tpu as pltpu


def _round_up(x, m):
    return (x + m - 1) // m * m


def _cdiv(a, b):
    return -(-a // b)


def _vmem_capacity_bytes():
    # Per-generation physical VMEM (v5e/v6e: 128 MiB, v7x: 64 MiB per core).
    try:
        return int(pltpu.get_tpu_info().vmem_capacity_bytes)
    except Exception:
        return 64 << 20        # assume the tightest generation (v7x)


def _bert_classifier_kernel(x_ref, vl_ref, wp_ref, bp_ref, wc_ref, bc_ref,
                            keep_ref, out_ref, acc_ref,
                            *, seq_len, seq_tile, batch_tile, hidden_p):
    j = pl.program_id(1)                      # sequence (reduction) axis

    @pl.when(j == 0)
    def _():
        acc_ref[...] = jnp.zeros_like(acc_ref)

    # --- gen_attention_mask: mask[b, 0, s] = 1.0 iff global position s < valid_length[b]
    pos = lax.broadcasted_iota(jnp.int32, (batch_tile, 1, seq_tile), 2) + j * seq_tile
    vl = vl_ref[...]                                           # [tb, 1] int32
    mask = (pos < vl[:, :, None]).astype(jnp.bfloat16)         # [tb, 1, ts]

    # --- masked-sum pooling as ONE batched MXU contraction over the sequence tile
    #     ('bqs,bsh->bqh' with q = 1; bf16 operands, f32 accumulation)
    acc_ref[...] += jnp.einsum('bqs,bsh->bqh', mask, x_ref[...],
                               preferred_element_type=jnp.float32)   # [tb, 1, Hp]

    # --- finalize on the last sequence block: pooler + dropout + classifier
    @pl.when(j == pl.num_programs(1) - 1)
    def _():
        denom = jnp.clip(vl.astype(jnp.float32), 1.0, float(seq_len))   # [tb, 1]
        pooled = acc_ref[...].reshape(batch_tile, hidden_p) / denom     # [tb, Hp]

        # synthetic "bert" pooler: tanh(dense(masked-mean))
        pooler = jnp.tanh(
            jnp.dot(pooled.astype(jnp.bfloat16), wp_ref[...],
                    preferred_element_type=jnp.float32) + bp_ref[...])

        # dropout: keep mask from the wrapper; 1/(1-p) scale folded into wc
        dropped = pooler * keep_ref[...]

        # classifier: Linear(hidden -> num_classes), lane-dense padded output
        out_ref[...] = (
            jnp.dot(dropped.astype(jnp.bfloat16), wc_ref[...],
                    preferred_element_type=jnp.float32) + bc_ref[...])


def bert_classifier_forward(token_ids, valid_length, segment_ids, params,
                            seed=0, dr_rate=0.5, training=True):
    """token_ids/segment_ids: [B, S] int32; valid_length: [B] int32 -> [B, C] f32 logits."""
    # ---- embedding glue (plain JAX); emit bf16 to halve the kernel's HBM read
    x = (jnp.take(params["tok_emb"], token_ids, axis=0)
         + jnp.take(params["seg_emb"], segment_ids, axis=0))    # [B, S, H] f32
    B, S, H = x.shape
    C = params["wc"].shape[1]

    # ---- lane-dense padding of the feature axes
    Hp = _round_up(H, 128)                   # hidden on the 128-lane axis
    Cp = _round_up(C, 128)                   # lane-dense output

    # ---- batch tile: grow with B, but keep >= 2 batch tiles when possible so
    #      the "parallel" grid axis can shard across v7x's 2 TensorCores.
    if B >= 64:
        tb = 32
    elif B >= 32:
        tb = 16
    else:
        tb = 8
    Bp = _round_up(B, tb)

    # ---- sequence tile: as large as the per-generation VMEM budget allows while
    #      hugging S (minimal padded-token DMA waste); multiple of 16 for bf16
    #      sublane packing.
    vmem_phys = _vmem_capacity_bytes()
    x_pair_budget = int(vmem_phys * 0.40)          # both double buffers of the x tile
    per_token_bytes = tb * Hp * 2                  # bf16 bytes per sequence position
    ts_cap = max(16, (x_pair_budget // (2 * per_token_bytes)) // 16 * 16)
    ts = _round_up(_cdiv(S, _cdiv(S, ts_cap)), 16)
    Sp = _round_up(S, ts)

    x = jnp.pad(x, ((0, Bp - B), (0, Sp - S), (0, Hp - H))).astype(jnp.bfloat16)
    vl = jnp.pad(valid_length.astype(jnp.int32), (0, Bp - B)).reshape(Bp, 1)

    wp = jnp.pad(params["wp"], ((0, Hp - H), (0, Hp - H))).astype(jnp.bfloat16)
    bp = jnp.pad(params["bp"].reshape(1, H), ((0, 0), (0, Hp - H))).astype(jnp.float32)
    wc = jnp.pad(params["wc"], ((0, Hp - H), (0, Cp - C))).astype(jnp.float32)
    bc = jnp.pad(params["bc"].reshape(1, C), ((0, 0), (0, Cp - C))).astype(jnp.float32)

    # ---- dropout (train mode): keep mask via jax.random, 1/(1-p) folded into wc
    use_dropout = training and (dr_rate is not None) and (dr_rate > 0.0)
    if use_dropout:
        assert dr_rate < 1.0, "dr_rate must be < 1 (inverted dropout divides by 1-p)"
        keep = jax.random.bernoulli(jax.random.PRNGKey(seed),
                                    p=1.0 - dr_rate, shape=(Bp, Hp)).astype(jnp.float32)
        wc = wc * (1.0 / (1.0 - dr_rate))
    else:
        keep = jnp.ones((Bp, Hp), jnp.float32)
    wc = wc.astype(jnp.bfloat16)

    grid = (Bp // tb, Sp // ts)

    # ---- explicit scoped-VMEM limit from the actual buffer footprint
    #      (the resident weights could additionally be single-buffered with
    #       pipeline_mode=pl.Buffered(1) on v7x; skipped — they are small next
    #       to the double-buffered x tile.)
    x_buf_bytes = 2 * tb * ts * Hp * 2                              # double-buffered x
    resident_bytes = 2 * (Hp * Hp * 2 + Hp * Cp * 2                 # wp, wc (bf16)
                          + 8 * Hp * 4 + 8 * Cp * 4                 # bp, bc
                          + tb * Hp * 4                             # keep mask
                          + max(tb, 8) * 128 * 4                    # valid_length tile
                          + tb * Cp * 4)                            # output tile
    acc_bytes = tb * 8 * Hp * 4                                     # [tb, 1, Hp] scratch
    vmem_limit = int(min(max(x_buf_bytes + resident_bytes + acc_bytes + (8 << 20),
                             32 << 20),
                         vmem_phys * 3 // 4))

    cost = pl.CostEstimate(
        flops=2 * Bp * Sp * Hp + 2 * Bp * Hp * (Hp + Cp),
        transcendentals=Bp * Hp,
        bytes_accessed=(Bp * Sp * Hp * 2 + Hp * Hp * 2 + Hp * Cp * 2
                        + Bp * Hp * 4 + Bp * Cp * 4))

    kernel = functools.partial(_bert_classifier_kernel,
                               seq_len=S, seq_tile=ts, batch_tile=tb, hidden_p=Hp)

    out = pl.pallas_call(
        kernel,
        out_shape=jax.ShapeDtypeStruct((Bp, Cp), jnp.float32),
        grid=grid,
        in_specs=[
            pl.BlockSpec((tb, ts, Hp), lambda i, j: (i, j, 0)),   # x (pipelined)
            pl.BlockSpec((tb, 1), lambda i, j: (i, 0)),           # valid_length
            pl.BlockSpec((Hp, Hp), lambda i, j: (0, 0)),          # pooler W (bf16, resident)
            pl.BlockSpec((1, Hp), lambda i, j: (0, 0)),           # pooler b
            pl.BlockSpec((Hp, Cp), lambda i, j: (0, 0)),          # classifier W (scaled, bf16)
            pl.BlockSpec((1, Cp), lambda i, j: (0, 0)),           # classifier b
            pl.BlockSpec((tb, Hp), lambda i, j: (i, 0)),          # dropout keep mask
        ],
        out_specs=pl.BlockSpec((tb, Cp), lambda i, j: (i, 0)),
        scratch_shapes=[pltpu.VMEM((tb, 1, Hp), jnp.float32)],    # pooled-sum accumulator
        compiler_params=pltpu.CompilerParams(
            dimension_semantics=("parallel", "arbitrary"),
            vmem_limit_bytes=vmem_limit),
        cost_estimate=cost,
    )(x, vl, wp, bp, wc, bc, keep)

    return out[:B, :C]


def make_params(hidden_size=128, num_classes=10, vocab_size=50, n_segments=2):
    key = jax.random.PRNGKey(0)
    k1, k2, k3, k4 = jax.random.split(key, 4)
    scale = 0.02
    return {
        "tok_emb": scale * jax.random.normal(k1, (vocab_size, hidden_size), jnp.float32),
        "seg_emb": scale * jax.random.normal(k2, (n_segments, hidden_size), jnp.float32),
        "wp": scale * jax.random.normal(k3, (hidden_size, hidden_size), jnp.float32),
        "bp": jnp.zeros((hidden_size,), jnp.float32),
        "wc": scale * jax.random.normal(k4, (hidden_size, num_classes), jnp.float32),
        "bc": jnp.zeros((num_classes,), jnp.float32),
    }


if __name__ == "__main__":
    # Small, lane-dense demo shapes (hidden = 128 keeps every vreg lane busy).
    B, S, H, C = 2, 8, 128, 10
    params = make_params(hidden_size=H, num_classes=C)

    key = jax.random.PRNGKey(0)
    kt, ks = jax.random.split(key)
    token_ids = jax.random.randint(kt, (B, S), 0, 50, dtype=jnp.int32)
    segment_ids = jax.random.randint(ks, (B, S), 0, 2, dtype=jnp.int32)
    valid_length = jnp.asarray([5, 8], dtype=jnp.int32)

    logits = bert_classifier_forward(token_ids, valid_length, segment_ids,
                                     params, seed=0, dr_rate=0.5, training=True)
    jax.block_until_ready(logits)
    assert logits.shape == (B, C) and logits.dtype == jnp.float32
    assert bool(jnp.all(jnp.isfinite(logits)))
    print("KERNEL_OK")
</pallas_src>

<mosaic_0001>
module attributes {stable_mosaic.version = 11 : i64} {
  func.func @_bert_classifier_kernel(%arg0: i32, %arg1: i32, %arg2: memref<8x16x128xbf16, #tpu.memory_space<vmem>>, %arg3: memref<8x1xi32, #tpu.memory_space<vmem>>, %arg4: memref<128x128xbf16, #tpu.memory_space<vmem>>, %arg5: memref<1x128xf32, #tpu.memory_space<vmem>>, %arg6: memref<128x128xbf16, #tpu.memory_space<vmem>>, %arg7: memref<1x128xf32, #tpu.memory_space<vmem>>, %arg8: memref<8x128xf32, #tpu.memory_space<vmem>>, %arg9: memref<8x128xf32, #tpu.memory_space<vmem>>, %arg10: memref<8x1x128xf32, #tpu.memory_space<vmem>>) attributes {dimension_semantics = [#tpu.dimension_semantics<parallel>, #tpu.dimension_semantics<arbitrary>], iteration_bounds = array<i64: 1, 1>, scalar_prefetch = 0 : i64, scratch_operands = 1 : i64, tpu.core_type = #tpu.core_type<tc>, window_params = [{transform_indices = @transform_0, window_bounds = array<i64: 8, 16, 128>}, {transform_indices = @transform_1, window_bounds = array<i64: 8, 1>}, {pipeline_mode = #tpu.pipeline_mode<synchronous>, transform_indices = @transform_2, window_bounds = array<i64: 128, 128>}, {pipeline_mode = #tpu.pipeline_mode<synchronous>, transform_indices = @transform_3, window_bounds = array<i64: 1, 128>}, {pipeline_mode = #tpu.pipeline_mode<synchronous>, transform_indices = @transform_4, window_bounds = array<i64: 128, 128>}, {pipeline_mode = #tpu.pipeline_mode<synchronous>, transform_indices = @transform_5, window_bounds = array<i64: 1, 128>}, {transform_indices = @transform_6, window_bounds = array<i64: 8, 128>}, {transform_indices = @transform_7, window_bounds = array<i64: 8, 128>}]} {
    %c0_i32 = arith.constant 0 : i32
    %0 = arith.cmpi eq, %arg1, %c0_i32 : i32
    %1 = arith.extui %0 : i1 to i32
    %c0_i32_0 = arith.constant 0 : i32
    %2 = arith.cmpi ne, %1, %c0_i32_0 : i32
    scf.if %2 {
      %cst_13 = arith.constant 0.000000e+00 : f32
      %22 = vector.broadcast %cst_13 : f32 to vector<8x1x128xf32>
      %c0_14 = arith.constant 0 : index
      %c0_15 = arith.constant 0 : index
      %c0_16 = arith.constant 0 : index
      %23 = vector.load %arg10[%c0_14, %c0_15, %c0_16] : memref<8x1x128xf32, #tpu.memory_space<vmem>>, vector<8x1x128xf32>
      tpu.vector_store %arg10[%c0_14, %c0_15, %c0_16], %22 {strides = array<i32>} : memref<8x1x128xf32, #tpu.memory_space<vmem>>, vector<8x1x128xf32>,
    } else {
    }
    %3 = tpu.iota {dimensions = array<i32: 2>} : vector<8x1x16xi32>
    %c16_i32 = arith.constant 16 : i32
    %4 = arith.muli %arg1, %c16_i32 : i32
    %5 = vector.broadcast %4 : i32 to vector<8x1x16xi32>
    %6 = arith.addi %3, %5 : vector<8x1x16xi32>
    %c0 = arith.constant 0 : index
    %c0_1 = arith.constant 0 : index
    %7 = vector.load %arg3[%c0, %c0_1] : memref<8x1xi32, #tpu.memory_space<vmem>>, vector<8x1xi32>
    %8 = vector.shape_cast %7 : vector<8x1xi32> to vector<8x1x1xi32>
    %9 = vector.broadcast %8 : vector<8x1x1xi32> to vector<8x1x16xi32>
    %10 = arith.cmpi slt, %6, %9 : vector<8x1x16xi32>
    %11 = arith.extui %10 : vector<8x1x16xi1> to vector<8x1x16xi32>
    %12 = arith.sitofp %11 : vector<8x1x16xi32> to vector<8x1x16xf32>
    %13 = arith.truncf %12 : vector<8x1x16xf32> to vector<8x1x16xbf16>
    %c0_2 = arith.constant 0 : index
    %c0_3 = arith.constant 0 : index
    %c0_4 = arith.constant 0 : index
    %14 = vector.load %arg10[%c0_2, %c0_3, %c0_4] : memref<8x1x128xf32, #tpu.memory_space<vmem>>, vector<8x1x128xf32>
    %c0_5 = arith.constant 0 : index
    %c0_6 = arith.constant 0 : index
    %c0_7 = arith.constant 0 : index
    %15 = vector.load %arg2[%c0_5, %c0_6, %c0_7] : memref<8x16x128xbf16, #tpu.memory_space<vmem>>, vector<8x16x128xbf16>
    "tpu.trace_start"() <{level = 10 : i32, message = "bqs,bsh->bqh"}> : () -> ()
    %cst = arith.constant dense<0.000000e+00> : vector<8x1x128xf32>
    %16 = tpu.matmul %13, %15, %cst {dimension_numbers = #tpu.dot_dimension_numbers<[2], [1], [1], [2], [0, 0, 0, 1, 1, 2], [0], [0]>} : vector<8x1x16xbf16>, vector<8x16x128xbf16>, vector<8x1x128xf32> -> vector<8x1x128xf32>
    "tpu.trace_stop"() : () -> ()
    %17 = arith.addf %14, %16 : vector<8x1x128xf32>
    %c0_8 = arith.constant 0 : index
    %c0_9 = arith.constant 0 : index
    %c0_10 = arith.constant 0 : index
    %18 = vector.load %arg10[%c0_8, %c0_9, %c0_10] : memref<8x1x128xf32, #tpu.memory_space<vmem>>, vector<8x1x128xf32>
    tpu.vector_store %arg10[%c0_8, %c0_9, %c0_10], %17 {strides = array<i32>} : memref<8x1x128xf32, #tpu.memory_space<vmem>>, vector<8x1x128xf32>,
    %c0_i32_11 = arith.constant 0 : i32
    %19 = arith.cmpi eq, %arg1, %c0_i32_11 : i32
    %20 = arith.extui %19 : i1 to i32
    %c0_i32_12 = arith.constant 0 : i32
    %21 = arith.cmpi ne, %20, %c0_i32_12 : i32
    scf.if %21 {
      %22 = arith.sitofp %7 : vector<8x1xi32> to vector<8x1xf32>
      %cst_13 = arith.constant 1.000000e+00 : f32
      %cst_14 = arith.constant 8.000000e+00 : f32
      %23 = vector.broadcast %cst_13 : f32 to vector<8x1xf32>
      %24 = arith.maximumf %23, %22 : vector<8x1xf32>
      %25 = vector.broadcast %cst_14 : f32 to vector<8x1xf32>
      %26 = arith.minimumf %25, %24 : vector<8x1xf32>
      %c0_15 = arith.constant 0 : index
      %c0_16 = arith.constant 0 : index
      %c0_17 = arith.constant 0 : index
      %27 = vector.load %arg10[%c0_15, %c0_16, %c0_17] : memref<8x1x128xf32, #tpu.memory_space<vmem>>, vector<8x1x128xf32>
      %28 = vector.shape_cast %27 : vector<8x1x128xf32> to vector<8x128xf32>
      %29 = vector.broadcast %26 : vector<8x1xf32> to vector<8x128xf32>
      %30 = arith.divf %28, %29 : vector<8x128xf32>
      %31 = arith.truncf %30 : vector<8x128xf32> to vector<8x128xbf16>
      %c0_18 = arith.constant 0 : index
      %c0_19 = arith.constant 0 : index
      %32 = vector.load %arg4[%c0_18, %c0_19] : memref<128x128xbf16, #tpu.memory_space<vmem>>, vector<128x128xbf16>
      %cst_20 = arith.constant dense<0.000000e+00> : vector<8x128xf32>
      %33 = tpu.matmul %31, %32, %cst_20 {dimension_numbers = #tpu.dot_dimension_numbers<[1], [0], [0], [1], [0, 0, 1, 1], [], []>} : vector<8x128xbf16>, vector<128x128xbf16>, vector<8x128xf32> -> vector<8x128xf32>
      %c0_21 = arith.constant 0 : index
      %c0_22 = arith.constant 0 : index
      %34 = vector.load %arg5[%c0_21, %c0_22] : memref<1x128xf32, #tpu.memory_space<vmem>>, vector<1x128xf32>
      %35 = vector.broadcast %34 : vector<1x128xf32> to vector<8x128xf32>
      %36 = arith.addf %33, %35 : vector<8x128xf32>
      %37 = math.tanh %36 : vector<8x128xf32>
      %c0_23 = arith.constant 0 : index
      %c0_24 = arith.constant 0 : index
      %38 = vector.load %arg8[%c0_23, %c0_24] : memref<8x128xf32, #tpu.memory_space<vmem>>, vector<8x128xf32>
      %39 = arith.mulf %37, %38 : vector<8x128xf32>
      %40 = arith.truncf %39 : vector<8x128xf32> to vector<8x128xbf16>
      %c0_25 = arith.constant 0 : index
      %c0_26 = arith.constant 0 : index
      %41 = vector.load %arg6[%c0_25, %c0_26] : memref<128x128xbf16, #tpu.memory_space<vmem>>, vector<128x128xbf16>
      %cst_27 = arith.constant dense<0.000000e+00> : vector<8x128xf32>
      %42 = tpu.matmul %40, %41, %cst_27 {dimension_numbers = #tpu.dot_dimension_numbers<[1], [0], [0], [1], [0, 0, 1, 1], [], []>} : vector<8x128xbf16>, vector<128x128xbf16>, vector<8x128xf32> -> vector<8x128xf32>
      %c0_28 = arith.constant 0 : index
      %c0_29 = arith.constant 0 : index
      %43 = vector.load %arg7[%c0_28, %c0_29] : memref<1x128xf32, #tpu.memory_space<vmem>>, vector<1x128xf32>
      %44 = vector.broadcast %43 : vector<1x128xf32> to vector<8x128xf32>
      %45 = arith.addf %42, %44 : vector<8x128xf32>
      %c0_30 = arith.constant 0 : index
      %c0_31 = arith.constant 0 : index
      %46 = vector.load %arg9[%c0_30, %c0_31] : memref<8x128xf32, #tpu.memory_space<vmem>>, vector<8x128xf32>
      tpu.vector_store %arg9[%c0_30, %c0_31], %45 {strides = array<i32>} : memref<8x128xf32, #tpu.memory_space<vmem>>, vector<8x128xf32>,
    } else {
    }
    return
  }
  func.func @transform_0(%arg0: i32, %arg1: i32) -> (i32, i32, i32) {
    %c0_i32 = arith.constant 0 : i32
    %c0_i32_0 = arith.constant 0 : i32
    return %arg0, %arg1, %c0_i32 : i32, i32, i32
  }
  func.func @transform_1(%arg0: i32, %arg1: i32) -> (i32, i32) {
    %c0_i32 = arith.constant 0 : i32
    %c0_i32_0 = arith.constant 0 : i32
    return %arg0, %c0_i32 : i32, i32
  }
  func.func @transform_2(%arg0: i32, %arg1: i32) -> (i32, i32) {
    %c0_i32 = arith.constant 0 : i32
    %c0_i32_0 = arith.constant 0 : i32
    %c0_i32_1 = arith.constant 0 : i32
    return %c0_i32, %c0_i32_0 : i32, i32
  }
  func.func @transform_3(%arg0: i32, %arg1: i32) -> (i32, i32) {
    %c0_i32 = arith.constant 0 : i32
    %c0_i32_0 = arith.constant 0 : i32
    %c0_i32_1 = arith.constant 0 : i32
    return %c0_i32, %c0_i32_0 : i32, i32
  }
  func.func @transform_4(%arg0: i32, %arg1: i32) -> (i32, i32) {
    %c0_i32 = arith.constant 0 : i32
    %c0_i32_0 = arith.constant 0 : i32
    %c0_i32_1 = arith.constant 0 : i32
    return %c0_i32, %c0_i32_0 : i32, i32
  }
  func.func @transform_5(%arg0: i32, %arg1: i32) -> (i32, i32) {
    %c0_i32 = arith.constant 0 : i32
    %c0_i32_0 = arith.constant 0 : i32
    %c0_i32_1 = arith.constant 0 : i32
    return %c0_i32, %c0_i32_0 : i32, i32
  }
  func.func @transform_6(%arg0: i32, %arg1: i32) -> (i32, i32) {
    %c0_i32 = arith.constant 0 : i32
    %c0_i32_0 = arith.constant 0 : i32
    return %arg0, %c0_i32 : i32, i32
  }
  func.func @transform_7(%arg0: i32, %arg1: i32) -> (i32, i32) {
    %c0_i32 = arith.constant 0 : i32
    %c0_i32_0 = arith.constant 0 : i32
    return %arg0, %c0_i32 : i32, i32
  }
}

</mosaic_0001>

<llo_original>
// kernel: tpu_custom_call.1
$region0: #{tpu_custom_call.1}
  #allocation0 [shape = 'u32[]', space=smem, size = 0x4, offset = 0x4, fixed_abs, tag = 'smem constant byte address 0x4 - core index']
  #allocation1 [shape = 'u32[144,128]{1,0:T(1,128)}', space=vmem, size = 0x12000, scoped, tag = 'internal scratch']
  #allocation2 [shape = 'f32[8,1,128]{2,1,0:T(1,128)}', space=vmem, size = 0x1000, scoped, tag = 'scratch operand']
  %s0 = inlined_call_operand.hbm [shape: bf16[8,16,128], index: 0, kind: input, shape index: {}]
  %s1 = inlined_call_operand.vmem [shape: s32[8,1], index: 1, kind: input, shape index: {}]
  %s2 = inlined_call_operand.hbm [shape: bf16[128,128], index: 2, kind: input, shape index: {}]
  %s3 = inlined_call_operand.vmem [shape: f32[1,128], index: 3, kind: input, shape index: {}]
  %s4 = inlined_call_operand.hbm [shape: bf16[128,128], index: 4, kind: input, shape index: {}]
  %s5 = inlined_call_operand.vmem [shape: f32[1,128], index: 5, kind: input, shape index: {}]
  %s6 = inlined_call_operand.vmem [shape: f32[8,128], index: 6, kind: input, shape index: {}]
  %s7 = inlined_call_operand.hbm [shape: f32[8,128], index: 7, kind: output, shape index: {}]
  %s8 = sld [smem:[#allocation0]]
  $region58: #{tpu_custom_call.1} parent=0
    _
  %s10 = ssub.s32 1, %s8
  %s11 = scalar_select 0, %s10, %s8
  $region1: #{tpu_custom_call.1} parent=0
    #allocation3 [shape = 'u8[32768]{0}', space=vmem, size = 0x8000, scoped, tag = 'input window, operand 0, single buffered']
    #allocation4 [shape = 's32[1]{0}', space=sflag, size = 0x4, scoped, tag = 'scoped memory for tpu_custom_call.1']
    #allocation5 [shape = 's32[1]{0}', space=sflag, size = 0x4, scoped, tag = 'scoped memory for tpu_custom_call.1']
    #allocation6 [shape = 'u8[32768]{0}', space=vmem, size = 0x8000, scoped, tag = 'input window, operand 2, single buffered']
    #allocation7 [shape = 's32[1]{0}', space=sflag, size = 0x4, scoped, tag = 'scoped memory for tpu_custom_call.1']
    #allocation8 [shape = 'u8[32768]{0}', space=vmem, size = 0x8000, scoped, tag = 'input window, operand 4, single buffered']
    #allocation9 [shape = 'u8[4096]{0}', space=vmem, size = 0x1000, scoped, tag = 'output window, operand 0, single buffered']
    %12 = vsyncpa [#allocation4], 0
    %13 = vsyncpa [#allocation7], 0
    %14 = vsyncpa [#allocation5], 0
    // Predicated region
    $region2: #{tpu_custom_call.1} parent=1 // pred_check
      _
    $region3: #{tpu_custom_call.1} parent=1 // pred_check_branch
      %16 = sbr.rel (0) target = $region5
    $region4: #{tpu_custom_call.1} parent=1 // pred_region
      %s18 = ssub.s32 1024, 1024
      %19 = vsyncadd [#allocation4], %s18
      %s20 = sshll.u32 [#allocation3], 4
      %s21 = int_to_ptr.vmem [resolvable:$true] %s20
      %26 = dma.hbm_to_vmem [thread:$0]  %s0, 1024, %s21, [#allocation4], 64, 64, 4
    $region5: #{tpu_custom_call.1} parent=1 // pred_fallthru
      _
    // Predicated region
    $region6: #{tpu_custom_call.1} parent=1 // pred_check
      _
    $region7: #{tpu_custom_call.1} parent=1 // pred_check_branch
      %28 = sbr.rel (0) target = $region9
    $region8: #{tpu_custom_call.1} parent=1 // pred_region
      _
    $region9: #{tpu_custom_call.1} parent=1 // pred_fallthru
      _
    // Predicated region
    $region10: #{tpu_custom_call.1} parent=1 // pred_check
      _
    $region11: #{tpu_custom_call.1} parent=1 // pred_check_branch
      %30 = sbr.rel (0) target = $region13
    $region12: #{tpu_custom_call.1} parent=1 // pred_region
      %s32 = ssub.s32 1024, 1024
      %33 = vsyncadd [#allocation7], %s32
      %s34 = sshll.u32 [#allocation6], 4
      %s35 = int_to_ptr.vmem [resolvable:$true] %s34
      %40 = dma.hbm_to_vmem [thread:$0]  %s2, 1024, %s35, [#allocation7], 64, 64, 4
    $region13: #{tpu_custom_call.1} parent=1 // pred_fallthru
      _
    // Predicated region
    $region14: #{tpu_custom_call.1} parent=1 // pred_check
      _
    $region15: #{tpu_custom_call.1} parent=1 // pred_check_branch
      %42 = sbr.rel (0) target = $region17
    $region16: #{tpu_custom_call.1} parent=1 // pred_region
      _
    $region17: #{tpu_custom_call.1} parent=1 // pred_fallthru
      _
    // Predicated region
    $region18: #{tpu_custom_call.1} parent=1 // pred_check
      _
    $region19: #{tpu_custom_call.1} parent=1 // pred_check_branch
      %44 = sbr.rel (0) target = $region21
    $region20: #{tpu_custom_call.1} parent=1 // pred_region
      %s46 = ssub.s32 1024, 1024
      %47 = vsyncadd [#allocation7], %s46
      %s48 = sshll.u32 [#allocation8], 4
      %s49 = int_to_ptr.vmem [resolvable:$true] %s48
      %54 = dma.hbm_to_vmem [thread:$0]  %s4, 1024, %s49, [#allocation7], 64, 64, 4
    $region21: #{tpu_custom_call.1} parent=1 // pred_fallthru
      _
    // Predicated region
    $region22: #{tpu_custom_call.1} parent=1 // pred_check
      _
    $region23: #{tpu_custom_call.1} parent=1 // pred_check_branch
      %56 = sbr.rel (0) target = $region25
    $region24: #{tpu_custom_call.1} parent=1 // pred_region
      _
    $region25: #{tpu_custom_call.1} parent=1 // pred_fallthru
      _
    // Predicated region
    $region26: #{tpu_custom_call.1} parent=1 // pred_check
      _
    $region27: #{tpu_custom_call.1} parent=1 // pred_check_branch
      %58 = sbr.rel (0) target = $region29
    $region28: #{tpu_custom_call.1} parent=1 // pred_region
      _
    $region29: #{tpu_custom_call.1} parent=1 // pred_fallthru
      _
    // Predicated region
    $region30: #{tpu_custom_call.1} parent=1 // pred_check
      _
    $region31: #{tpu_custom_call.1} parent=1 // pred_check_branch
      %60 = sbr.rel (0) target = $region33
    $region32: #{tpu_custom_call.1} parent=1 // pred_region
      %61 = dma.done [#allocation4], 1024
    $region33: #{tpu_custom_call.1} parent=1 // pred_fallthru
      _
    // Predicated region
    $region34: #{tpu_custom_call.1} parent=1 // pred_check
      _
    $region35: #{tpu_custom_call.1} parent=1 // pred_check_branch
      %63 = sbr.rel (0) target = $region37
    $region36: #{tpu_custom_call.1} parent=1 // pred_region
      %64 = dma.done [#allocation7], 1024
    $region37: #{tpu_custom_call.1} parent=1 // pred_fallthru
      _
    // Predicated region
    $region38: #{tpu_custom_call.1} parent=1 // pred_check
      _
    $region39: #{tpu_custom_call.1} parent=1 // pred_check_branch
      %66 = sbr.rel (0) target = $region41
    $region40: #{tpu_custom_call.1} parent=1 // pred_region
      %67 = dma.done [#allocation7], 1024
    $region41: #{tpu_custom_call.1} parent=1 // pred_fallthru
      _
    %p69 = scmp.eq.s32.totalorder 0, 0
    // Predicated region
    $region42: #{tpu_custom_call.1} parent=1 // pred_check
      %p70 = pneg %p69
    $region43: #{tpu_custom_call.1} parent=1 // pred_check_branch
      %72 = sbr.rel (%p70) target = $region45
    $region44: #{tpu_custom_call.1} parent=1 // pred_region
      %73 = vst [vmem:[#allocation2] sm:$0x1] 0.0
      %74 = vst [vmem:[#allocation2 + $0x1] sm:$0x1] 0.0
      %75 = vst [vmem:[#allocation2 + $0x2] sm:$0x1] 0.0
      %76 = vst [vmem:[#allocation2 + $0x3] sm:$0x1] 0.0
      %77 = vst [vmem:[#allocation2 + $0x4] sm:$0x1] 0.0
      %78 = vst [vmem:[#allocation2 + $0x5] sm:$0x1] 0.0
      %79 = vst [vmem:[#allocation2 + $0x6] sm:$0x1] 0.0
      %80 = vst [vmem:[#allocation2 + $0x7] sm:$0x1] 0.0
    $region45: #{tpu_custom_call.1} parent=1 // pred_fallthru
      _
    %v81 = vlaneseq
    %v82 = vand.u32 %v81, 127
    %s83 = smul.u32 0, 16
    %v84 = vstv %s83
    %v85 = vadd.s32 %v82, %v84
    %v86 = vld [vmem:[%s1] sm:$0xff]
    %v87 = vcombine.high %v86, %v86
    %v89 = vunpack.c.l.s4 1966171168
    %v90 = vunpack.c.0.s8 %v89
    %v91 = vlaneseq
    %v92 = vshrl.u32 %v91, 7
    %v93 = vsub.s32 %v90, %v92
    %v94 = vrot.slane %v86, %v93
    %v96 = vunpack.c.l.s4 1966171168
    %v97 = vunpack.c.0.s8 %v96
    %v98 = vlaneseq
    %v99 = vshrl.u32 %v98, 7
    %v100 = vsub.s32 %v97, %v99
    %v101 = vrot.slane %v87, %v100
    %v102 = vcombine.high %v94, %v94
    %v103 = vcombine.high %v101, %v101
    %v105 = vunpack.c.l.s4 1966171168
    %v106 = vunpack.c.0.s8 %v105
    %v107 = vlaneseq
    %v108 = vshrl.u32 %v107, 7
    %v109 = vsub.s32 %v106, %v108
    %v110 = vrot.slane %v94, %v109
    %v112 = vunpack.c.l.s4 1966171168
    %v113 = vunpack.c.0.s8 %v112
    %v114 = vlaneseq
    %v115 = vshrl.u32 %v114, 7
    %v116 = vsub.s32 %v113, %v115
    %v117 = vrot.slane %v101, %v116
    %v119 = vunpack.c.l.s4 1966171168
    %v120 = vunpack.c.0.s8 %v119
    %v121 = vlaneseq
    %v122 = vshrl.u32 %v121, 7
    %v123 = vsub.s32 %v120, %v122
    %v124 = vrot.slane %v102, %v123
    %v126 = vunpack.c.l.s4 1966171168
    %v127 = vunpack.c.0.s8 %v126
    %v128 = vlaneseq
    %v129 = vshrl.u32 %v128, 7
    %v130 = vsub.s32 %v127, %v129
    %v131 = vrot.slane %v103, %v130
    %v132 = vcombine.high %v110, %v110
    %v133 = vcombine.high %v117, %v117
    %v134 = vcombine.high %v124, %v124
    %v135 = vcombine.high %v131, %v131
    %136 = vset.pattern.permute.xlu0 0
    %137 = vperm.xlu0 %136, %v110
    %v138 = vpop.permute.xlu0 %137
    %v139 = vlaneseq
    %v140 = vshrl.u32 %v139, 7
    %v141 = vsub.s32 0, %v140
    %v142 = vrot.slane %v138, %v141
    %143 = vset.pattern.permute.xlu0 0
    %144 = vperm.xlu0 %143, %v124
    %v145 = vpop.permute.xlu0 %144
    %v146 = vlaneseq
    %v147 = vshrl.u32 %v146, 7
    %v148 = vsub.s32 0, %v147
    %v149 = vrot.slane %v145, %v148
    %150 = vset.pattern.permute.xlu0 0
    %151 = vperm.xlu0 %150, %v132
    %v152 = vpop.permute.xlu0 %151
    %v153 = vlaneseq
    %v154 = vshrl.u32 %v153, 7
    %v155 = vsub.s32 0, %v154
    %v156 = vrot.slane %v152, %v155
    %157 = vset.pattern.permute.xlu0 0
    %158 = vperm.xlu0 %157, %v134
    %v159 = vpop.permute.xlu0 %158
    %v160 = vlaneseq
    %v161 = vshrl.u32 %v160, 7
    %v162 = vsub.s32 0, %v161
    %v163 = vrot.slane %v159, %v162
    %164 = vset.pattern.permute.xlu0 0
    %165 = vperm.xlu0 %164, %v117
    %v166 = vpop.permute.xlu0 %165
    %v167 = vlaneseq
    %v168 = vshrl.u32 %v167, 7
    %v169 = vsub.s32 0, %v168
    %v170 = vrot.slane %v166, %v169
    %171 = vset.pattern.permute.xlu0 0
    %172 = vperm.xlu0 %171, %v131
    %v173 = vpop.permute.xlu0 %172
    %v174 = vlaneseq
    %v175 = vshrl.u32 %v174, 7
    %v176 = vsub.s32 0, %v175
    %v177 = vrot.slane %v173, %v176
    %178 = vset.pattern.permute.xlu0 0
    %179 = vperm.xlu0 %178, %v133
    %v180 = vpop.permute.xlu0 %179
    %v181 = vlaneseq
    %v182 = vshrl.u32 %v181, 7
    %v183 = vsub.s32 0, %v182
    %v184 = vrot.slane %v180, %v183
    %185 = vset.pattern.permute.xlu0 0
    %186 = vperm.xlu0 %185, %v135
    %v187 = vpop.permute.xlu0 %186
    %v188 = vlaneseq
    %v189 = vshrl.u32 %v188, 7
    %v190 = vsub.s32 0, %v189
    %v191 = vrot.slane %v187, %v190
    %vm192 = vcmp.lt.s32.totalorder %v85, %v142
    %vm193 = vcmp.lt.s32.totalorder %v85, %v149
    %vm194 = vcmp.lt.s32.totalorder %v85, %v156
    %vm195 = vcmp.lt.s32.totalorder %v85, %v163
    %vm196 = vcmp.lt.s32.totalorder %v85, %v170
    %vm197 = vcmp.lt.s32.totalorder %v85, %v177
    %vm198 = vcmp.lt.s32.totalorder %v85, %v184
    %vm199 = vcmp.lt.s32.totalorder %v85, %v191
    %v200 = vsel %vm192, 1, 0
    %v201 = vsel %vm193, 1, 0
    %v202 = vsel %vm194, 1, 0
    %v203 = vsel %vm195, 1, 0
    %v204 = vsel %vm196, 1, 0
    %v205 = vsel %vm197, 1, 0
    %v206 = vsel %vm198, 1, 0
    %v207 = vsel %vm199, 1, 0
    %v208 = vcvt.s32.f32 %v200
    %v209 = vcvt.s32.f32 %v201
    %v210 = vcvt.s32.f32 %v202
    %v211 = vcvt.s32.f32 %v203
    %v212 = vcvt.s32.f32 %v204
    %v213 = vcvt.s32.f32 %v205
    %v214 = vcvt.s32.f32 %v206
    %v215 = vcvt.s32.f32 %v207
    %v216 = vpack.c.bf16 %v208, %v208
    %v217 = vpack.c.bf16 %v209, %v209
    %v218 = vpack.c.bf16 %v210, %v210
    %v219 = vpack.c.bf16 %v211, %v211
    %v220 = vpack.c.bf16 %v212, %v212
    %v221 = vpack.c.bf16 %v213, %v213
    %v222 = vpack.c.bf16 %v214, %v214
    %v223 = vpack.c.bf16 %v215, %v215
    %v224 = vld [vmem:[#allocation2] sm:$0x1]
    %v225 = vld [vmem:[#allocation2 + $0x1] sm:$0x1]
    %v226 = vld [vmem:[#allocation2 + $0x2] sm:$0x1]
    %v227 = vld [vmem:[#allocation2 + $0x3] sm:$0x1]
    %v228 = vld [vmem:[#allocation2 + $0x4] sm:$0x1]
    %v229 = vld [vmem:[#allocation2 + $0x5] sm:$0x1]
    %v230 = vld [vmem:[#allocation2 + $0x6] sm:$0x1]
    %v231 = vld [vmem:[#allocation2 + $0x7] sm:$0x1]
    %v232 = vld [vmem:[#allocation3] sm:$0xf]
    %v233 = vld [vmem:[#allocation3 + $0x4] sm:$0xf]
    %v234 = vld [vmem:[#allocation3 + $0x8] sm:$0xf]
    %v235 = vld [vmem:[#allocation3 + $0xc] sm:$0xf]
    %v236 = vld [vmem:[#allocation3 + $0x10] sm:$0xf]
    %v237 = vld [vmem:[#allocation3 + $0x14] sm:$0xf]
    %v238 = vld [vmem:[#allocation3 + $0x18] sm:$0xf]
    %v239 = vld [vmem:[#allocation3 + $0x1c] sm:$0xf]
    %v240 = vld [vmem:[#allocation3 + $0x20] sm:$0xf]
    %v241 = vld [vmem:[#allocation3 + $0x24] sm:$0xf]
    %v242 = vld [vmem:[#allocation3 + $0x28] sm:$0xf]
    %v243 = vld [vmem:[#allocation3 + $0x2c] sm:$0xf]
    %v244 = vld [vmem:[#allocation3 + $0x30] sm:$0xf]
    %v245 = vld [vmem:[#allocation3 + $0x34] sm:$0xf]
    %v246 = vld [vmem:[#allocation3 + $0x38] sm:$0xf]
    %v247 = vld [vmem:[#allocation3 + $0x3c] sm:$0xf]
    %v250 = vunpack.c.l.b16 %v232
    %v251 = vunpack.c.l.b16 %v233
    %v252 = vpack.c.b16 %v251, %v250
    %vm254 = vcmask 130048
    %v256 = vsel %vm254, %v216, 0
    %258 = vmatprep.subr.bf16.mxu0 0
    %259 = vmatpush1.bf16.msra.mxu0 %v252
    %260 = vmatprep.subr.bf16.mxu0 0
    %261 = vmatpush1.bf16.msra.mxu0 0
    %262 = vmatprep.subr.bf16.mxu0 0
    %263 = vmatpush1.bf16.msra.mxu0 0
    %264 = vmatprep.subr.bf16.mxu0 0
    %265 = vmatpush1.bf16.msra.mxu0 0
    %266 = vmatprep.subr.bf16.mxu0 0
    %267 = vmatpush1.bf16.msra.mxu0 0
    %268 = vmatprep.subr.bf16.mxu0 0
    %269 = vmatpush1.bf16.msra.mxu0 0
    %270 = vmatprep.subr.bf16.mxu0 0
    %271 = vmatpush1.bf16.msra.mxu0 0
    %272 = vmatprep.subr.bf16.mxu0 0
    %273 = vmatpush1.bf16.msra.mxu0 0
    %274 = vmatprep.subr.bf16.mxu0 0
    %275 = vmatpush1.bf16.msra.mxu0 0
    %276 = vmatprep.subr.bf16.mxu0 0
    %277 = vmatpush1.bf16.msra.mxu0 0
    %278 = vmatprep.subr.bf16.mxu0 0
    %279 = vmatpush1.bf16.msra.mxu0 0
    %280 = vmatprep.subr.bf16.mxu0 0
    %281 = vmatpush1.bf16.msra.mxu0 0
    %282 = vmatprep.subr.bf16.mxu0 0
    %283 = vmatpush1.bf16.msra.mxu0 0
    %284 = vmatprep.subr.bf16.mxu0 0
    %285 = vmatpush1.bf16.msra.mxu0 0
    %286 = vmatprep.subr.bf16.mxu0 0
    %287 = vmatpush1.bf16.msra.mxu0 0
    %288 = vmatprep.subr.bf16.mxu0 0
    %289 = vmatpush1.bf16.msra.mxu0 0
    %290 = vmatprep.mubr.bf16.mxu0 0
    %291 = vmatmul.mubr.bf16.gmra.mrb[0].mxu0 %v256
    %v292 = vpop.f32.mrb[0].mxu0
    %v293 = vadd.f32 0.0, %v292
    %v294 = vpop.f32.mrb[0].mxu0
    %v295 = vpop.f32.mrb[0].mxu0
    %v296 = vpop.f32.mrb[0].mxu0
    %297 = vdwg.mxu0
    %v300 = vunpack.c.l.b16 %v234
    %v301 = vunpack.c.l.b16 %v235
    %v302 = vpack.c.b16 %v301, %v300
    %v305 = vsel %vm254, %v217, 0
    %307 = vmatprep.subr.bf16.mxu0 0
    %308 = vmatpush1.bf16.msra.mxu0 %v302
    %309 = vmatprep.subr.bf16.mxu0 0
    %310 = vmatpush1.bf16.msra.mxu0 0
    %311 = vmatprep.subr.bf16.mxu0 0
    %312 = vmatpush1.bf16.msra.mxu0 0
    %313 = vmatprep.subr.bf16.mxu0 0
    %314 = vmatpush1.bf16.msra.mxu0 0
    %315 = vmatprep.subr.bf16.mxu0 0
    %316 = vmatpush1.bf16.msra.mxu0 0
    %317 = vmatprep.subr.bf16.mxu0 0
    %318 = vmatpush1.bf16.msra.mxu0 0
    %319 = vmatprep.subr.bf16.mxu0 0
    %320 = vmatpush1.bf16.msra.mxu0 0
    %321 = vmatprep.subr.bf16.mxu0 0
    %322 = vmatpush1.bf16.msra.mxu0 0
    %323 = vmatprep.subr.bf16.mxu0 0
    %324 = vmatpush1.bf16.msra.mxu0 0
    %325 = vmatprep.subr.bf16.mxu0 0
    %326 = vmatpush1.bf16.msra.mxu0 0
    %327 = vmatprep.subr.bf16.mxu0 0
    %328 = vmatpush1.bf16.msra.mxu0 0
    %329 = vmatprep.subr.bf16.mxu0 0
    %330 = vmatpush1.bf16.msra.mxu0 0
    %331 = vmatprep.subr.bf16.mxu0 0
    %332 = vmatpush1.bf16.msra.mxu0 0
    %333 = vmatprep.subr.bf16.mxu0 0
    %334 = vmatpush1.bf16.msra.mxu0 0
    %335 = vmatprep.subr.bf16.mxu0 0
    %336 = vmatpush1.bf16.msra.mxu0 0
    %337 = vmatprep.subr.bf16.mxu0 0
    %338 = vmatpush1.bf16.msra.mxu0 0
    %339 = vmatprep.mubr.bf16.mxu0 0
    %340 = vmatmul.mubr.bf16.gmra.mrb[0].mxu0 %v305
    %v341 = vpop.f32.mrb[0].mxu0
    %v342 = vadd.f32 0.0, %v341
    %v343 = vpop.f32.mrb[0].mxu0
    %v344 = vpop.f32.mrb[0].mxu0
    %v345 = vpop.f32.mrb[0].mxu0
    %346 = vdwg.mxu0
    %v349 = vunpack.c.l.b16 %v236
    %v350 = vunpack.c.l.b16 %v237
    %v351 = vpack.c.b16 %v350, %v349
    %v354 = vsel %vm254, %v218, 0
    %356 = vmatprep.subr.bf16.mxu0 0
    %357 = vmatpush1.bf16.msra.mxu0 %v351
    %358 = vmatprep.subr.bf16.mxu0 0
    %359 = vmatpush1.bf16.msra.mxu0 0
    %360 = vmatprep.subr.bf16.mxu0 0
    %361 = vmatpush1.bf16.msra.mxu0 0
    %362 = vmatprep.subr.bf16.mxu0 0
    %363 = vmatpush1.bf16.msra.mxu0 0
    %364 = vmatprep.subr.bf16.mxu0 0
    %365 = vmatpush1.bf16.msra.mxu0 0
    %366 = vmatprep.subr.bf16.mxu0 0
    %367 = vmatpush1.bf16.msra.mxu0 0
    %368 = vmatprep.subr.bf16.mxu0 0
    %369 = vmatpush1.bf16.msra.mxu0 0
    %370 = vmatprep.subr.bf16.mxu0 0
    %371 = vmatpush1.bf16.msra.mxu0 0
    %372 = vmatprep.subr.bf16.mxu0 0
    %373 = vmatpush1.bf16.msra.mxu0 0
    %374 = vmatprep.subr.bf16.mxu0 0
    %375 = vmatpush1.bf16.msra.mxu0 0
    %376 = vmatprep.subr.bf16.mxu0 0
    %377 = vmatpush1.bf16.msra.mxu0 0
    %378 = vmatprep.subr.bf16.mxu0 0
    %379 = vmatpush1.bf16.msra.mxu0 0
    %380 = vmatprep.subr.bf16.mxu0 0
    %381 = vmatpush1.bf16.msra.mxu0 0
    %382 = vmatprep.subr.bf16.mxu0 0
    %383 = vmatpush1.bf16.msra.mxu0 0
    %384 = vmatprep.subr.bf16.mxu0 0
    %385 = vmatpush1.bf16.msra.mxu0 0
    %386 = vmatprep.subr.bf16.mxu0 0
    %387 = vmatpush1.bf16.msra.mxu0 0
    %388 = vmatprep.mubr.bf16.mxu0 0
    %389 = vmatmul.mubr.bf16.gmra.mrb[0].mxu0 %v354
    %v390 = vpop.f32.mrb[0].mxu0
    %v391 = vadd.f32 0.0, %v390
    %v392 = vpop.f32.mrb[0].mxu0
    %v393 = vpop.f32.mrb[0].mxu0
    %v394 = vpop.f32.mrb[0].mxu0
    %395 = vdwg.mxu0
    %v398 = vunpack.c.l.b16 %v238
    %v399 = vunpack.c.l.b16 %v239
    %v400 = vpack.c.b16 %v399, %v398
    %v403 = vsel %vm254, %v219, 0
    %405 = vmatprep.subr.bf16.mxu0 0
    %406 = vmatpush1.bf16.msra.mxu0 %v400
    %407 = vmatprep.subr.bf16.mxu0 0
    %408 = vmatpush1.bf16.msra.mxu0 0
    %409 = vmatprep.subr.bf16.mxu0 0
    %410 = vmatpush1.bf16.msra.mxu0 0
    %411 = vmatprep.subr.bf16.mxu0 0
    %412 = vmatpush1.bf16.msra.mxu0 0
    %413 = vmatprep.subr.bf16.mxu0 0
    %414 = vmatpush1.bf16.msra.mxu0 0
    %415 = vmatprep.subr.bf16.mxu0 0
    %416 = vmatpush1.bf16.msra.mxu0 0
    %417 = vmatprep.subr.bf16.mxu0 0
    %418 = vmatpush1.bf16.msra.mxu0 0
    %419 = vmatprep.subr.bf16.mxu0 0
    %420 = vmatpush1.bf16.msra.mxu0 0
    %421 = vmatprep.subr.bf16.mxu0 0
    %422 = vmatpush1.bf16.msra.mxu0 0
    %423 = vmatprep.subr.bf16.mxu0 0
    %424 = vmatpush1.bf16.msra.mxu0 0
    %425 = vmatprep.subr.bf16.mxu0 0
    %426 = vmatpush1.bf16.msra.mxu0 0
    %427 = vmatprep.subr.bf16.mxu0 0
    %428 = vmatpush1.bf16.msra.mxu0 0
    %429 = vmatprep.subr.bf16.mxu0 0
    %430 = vmatpush1.bf16.msra.mxu0 0
    %431 = vmatprep.subr.bf16.mxu0 0
    %432 = vmatpush1.bf16.msra.mxu0 0
    %433 = vmatprep.subr.bf16.mxu0 0
    %434 = vmatpush1.bf16.msra.mxu0 0
    %435 = vmatprep.subr.bf16.mxu0 0
    %436 = vmatpush1.bf16.msra.mxu0 0
    %437 = vmatprep.mubr.bf16.mxu0 0
    %438 = vmatmul.mubr.bf16.gmra.mrb[0].mxu0 %v403
    %v439 = vpop.f32.mrb[0].mxu0
    %v440 = vadd.f32 0.0, %v439
    %v441 = vpop.f32.mrb[0].mxu0
    %v442 = vpop.f32.mrb[0].mxu0
    %v443 = vpop.f32.mrb[0].mxu0
    %444 = vdwg.mxu0
    %v447 = vunpack.c.l.b16 %v240
    %v448 = vunpack.c.l.b16 %v241
    %v449 = vpack.c.b16 %v448, %v447
    %v452 = vsel %vm254, %v220, 0
    %454 = vmatprep.subr.bf16.mxu0 0
    %455 = vmatpush1.bf16.msra.mxu0 %v449
    %456 = vmatprep.subr.bf16.mxu0 0
    %457 = vmatpush1.bf16.msra.mxu0 0
    %458 = vmatprep.subr.bf16.mxu0 0
    %459 = vmatpush1.bf16.msra.mxu0 0
    %460 = vmatprep.subr.bf16.mxu0 0
    %461 = vmatpush1.bf16.msra.mxu0 0
    %462 = vmatprep.subr.bf16.mxu0 0
    %463 = vmatpush1.bf16.msra.mxu0 0
    %464 = vmatprep.subr.bf16.mxu0 0
    %465 = vmatpush1.bf16.msra.mxu0 0
    %466 = vmatprep.subr.bf16.mxu0 0
    %467 = vmatpush1.bf16.msra.mxu0 0
    %468 = vmatprep.subr.bf16.mxu0 0
    %469 = vmatpush1.bf16.msra.mxu0 0
    %470 = vmatprep.subr.bf16.mxu0 0
    %471 = vmatpush1.bf16.msra.mxu0 0
    %472 = vmatprep.subr.bf16.mxu0 0
    %473 = vmatpush1.bf16.msra.mxu0 0
    %474 = vmatprep.subr.bf16.mxu0 0
    %475 = vmatpush1.bf16.msra.mxu0 0
    %476 = vmatprep.subr.bf16.mxu0 0
    %477 = vmatpush1.bf16.msra.mxu0 0
    %478 = vmatprep.subr.bf16.mxu0 0
    %479 = vmatpush1.bf16.msra.mxu0 0
    %480 = vmatprep.subr.bf16.mxu0 0
    %481 = vmatpush1.bf16.msra.mxu0 0
    %482 = vmatprep.subr.bf16.mxu0 0
    %483 = vmatpush1.bf16.msra.mxu0 0
    %484 = vmatprep.subr.bf16.mxu0 0
    %485 = vmatpush1.bf16.msra.mxu0 0
    %486 = vmatprep.mubr.bf16.mxu0 0
    %487 = vmatmul.mubr.bf16.gmra.mrb[0].mxu0 %v452
    %v488 = vpop.f32.mrb[0].mxu0
    %v489 = vadd.f32 0.0, %v488
    %v490 = vpop.f32.mrb[0].mxu0
    %v491 = vpop.f32.mrb[0].mxu0
    %v492 = vpop.f32.mrb[0].mxu0
    %493 = vdwg.mxu0
    %v496 = vunpack.c.l.b16 %v242
    %v497 = vunpack.c.l.b16 %v243
    %v498 = vpack.c.b16 %v497, %v496
    %v501 = vsel %vm254, %v221, 0
    %503 = vmatprep.subr.bf16.mxu0 0
    %504 = vmatpush1.bf16.msra.mxu0 %v498
    %505 = vmatprep.subr.bf16.mxu0 0
    %506 = vmatpush1.bf16.msra.mxu0 0
    %507 = vmatprep.subr.bf16.mxu0 0
    %508 = vmatpush1.bf16.msra.mxu0 0
    %509 = vmatprep.subr.bf16.mxu0 0
    %510 = vmatpush1.bf16.msra.mxu0 0
    %511 = vmatprep.subr.bf16.mxu0 0
    %512 = vmatpush1.bf16.msra.mxu0 0
    %513 = vmatprep.subr.bf16.mxu0 0
    %514 = vmatpush1.bf16.msra.mxu0 0
    %515 = vmatprep.subr.bf16.mxu0 0
    %516 = vmatpush1.bf16.msra.mxu0 0
    %517 = vmatprep.subr.bf16.mxu0 0
    %518 = vmatpush1.bf16.msra.mxu0 0
    %519 = vmatprep.subr.bf16.mxu0 0
    %520 = vmatpush1.bf16.msra.mxu0 0
    %521 = vmatprep.subr.bf16.mxu0 0
    %522 = vmatpush1.bf16.msra.mxu0 0
    %523 = vmatprep.subr.bf16.mxu0 0
    %524 = vmatpush1.bf16.msra.mxu0 0
    %525 = vmatprep.subr.bf16.mxu0 0
    %526 = vmatpush1.bf16.msra.mxu0 0
    %527 = vmatprep.subr.bf16.mxu0 0
    %528 = vmatpush1.bf16.msra.mxu0 0
    %529 = vmatprep.subr.bf16.mxu0 0
    %530 = vmatpush1.bf16.msra.mxu0 0
    %531 = vmatprep.subr.bf16.mxu0 0
    %532 = vmatpush1.bf16.msra.mxu0 0
    %533 = vmatprep.subr.bf16.mxu0 0
    %534 = vmatpush1.bf16.msra.mxu0 0
    %535 = vmatprep.mubr.bf16.mxu0 0
    %536 = vmatmul.mubr.bf16.gmra.mrb[0].mxu0 %v501
    %v537 = vpop.f32.mrb[0].mxu0
    %v538 = vadd.f32 0.0, %v537
    %v539 = vpop.f32.mrb[0].mxu0
    %v540 = vpop.f32.mrb[0].mxu0
    %v541 = vpop.f32.mrb[0].mxu0
    %542 = vdwg.mxu0
    %v545 = vunpack.c.l.b16 %v244
    %v546 = vunpack.c.l.b16 %v245
    %v547 = vpack.c.b16 %v546, %v545
    %v550 = vsel %vm254, %v222, 0
    %552 = vmatprep.subr.bf16.mxu0 0
    %553 = vmatpush1.bf16.msra.mxu0 %v547
    %554 = vmatprep.subr.bf16.mxu0 0
    %555 = vmatpush1.bf16.msra.mxu0 0
    %556 = vmatprep.subr.bf16.mxu0 0
    %557 = vmatpush1.bf16.msra.mxu0 0
    %558 = vmatprep.subr.bf16.mxu0 0
    %559 = vmatpush1.bf16.msra.mxu0 0
    %560 = vmatprep.subr.bf16.mxu0 0
    %561 = vmatpush1.bf16.msra.mxu0 0
    %562 = vmatprep.subr.bf16.mxu0 0
    %563 = vmatpush1.bf16.msra.mxu0 0
    %564 = vmatprep.subr.bf16.mxu0 0
    %565 = vmatpush1.bf16.msra.mxu0 0
    %566 = vmatprep.subr.bf16.mxu0 0
    %567 = vmatpush1.bf16.msra.mxu0 0
    %568 = vmatprep.subr.bf16.mxu0 0
    %569 = vmatpush1.bf16.msra.mxu0 0
    %570 = vmatprep.subr.bf16.mxu0 0
    %571 = vmatpush1.bf16.msra.mxu0 0
    %572 = vmatprep.subr.bf16.mxu0 0
    %573 = vmatpush1.bf16.msra.mxu0 0
    %574 = vmatprep.subr.bf16.mxu0 0
    %575 = vmatpush1.bf16.msra.mxu0 0
    %576 = vmatprep.subr.bf16.mxu0 0
    %577 = vmatpush1.bf16.msra.mxu0 0
    %578 = vmatprep.subr.bf16.mxu0 0
    %579 = vmatpush1.bf16.msra.mxu0 0
    %580 = vmatprep.subr.bf16.mxu0 0
    %581 = vmatpush1.bf16.msra.mxu0 0
    %582 = vmatprep.subr.bf16.mxu0 0
    %583 = vmatpush1.bf16.msra.mxu0 0
    %584 = vmatprep.mubr.bf16.mxu0 0
    %585 = vmatmul.mubr.bf16.gmra.mrb[0].mxu0 %v550
    %v586 = vpop.f32.mrb[0].mxu0
    %v587 = vadd.f32 0.0, %v586
    %v588 = vpop.f32.mrb[0].mxu0
    %v589 = vpop.f32.mrb[0].mxu0
    %v590 = vpop.f32.mrb[0].mxu0
    %591 = vdwg.mxu0
    %v594 = vunpack.c.l.b16 %v246
    %v595 = vunpack.c.l.b16 %v247
    %v596 = vpack.c.b16 %v595, %v594
    %v599 = vsel %vm254, %v223, 0
    %601 = vmatprep.subr.bf16.mxu0 0
    %602 = vmatpush1.bf16.msra.mxu0 %v596
    %603 = vmatprep.subr.bf16.mxu0 0
    %604 = vmatpush1.bf16.msra.mxu0 0
    %605 = vmatprep.subr.bf16.mxu0 0
    %606 = vmatpush1.bf16.msra.mxu0 0
    %607 = vmatprep.subr.bf16.mxu0 0
    %608 = vmatpush1.bf16.msra.mxu0 0
    %609 = vmatprep.subr.bf16.mxu0 0
    %610 = vmatpush1.bf16.msra.mxu0 0
    %611 = vmatprep.subr.bf16.mxu0 0
    %612 = vmatpush1.bf16.msra.mxu0 0
    %613 = vmatprep.subr.bf16.mxu0 0
    %614 = vmatpush1.bf16.msra.mxu0 0
    %615 = vmatprep.subr.bf16.mxu0 0
    %616 = vmatpush1.bf16.msra.mxu0 0
    %617 = vmatprep.subr.bf16.mxu0 0
    %618 = vmatpush1.bf16.msra.mxu0 0
    %619 = vmatprep.subr.bf16.mxu0 0
    %620 = vmatpush1.bf16.msra.mxu0 0
    %621 = vmatprep.subr.bf16.mxu0 0
    %622 = vmatpush1.bf16.msra.mxu0 0
    %623 = vmatprep.subr.bf16.mxu0 0
    %624 = vmatpush1.bf16.msra.mxu0 0
    %625 = vmatprep.subr.bf16.mxu0 0
    %626 = vmatpush1.bf16.msra.mxu0 0
    %627 = vmatprep.subr.bf16.mxu0 0
    %628 = vmatpush1.bf16.msra.mxu0 0
    %629 = vmatprep.subr.bf16.mxu0 0
    %630 = vmatpush1.bf16.msra.mxu0 0
    %631 = vmatprep.subr.bf16.mxu0 0
    %632 = vmatpush1.bf16.msra.mxu0 0
    %633 = vmatprep.mubr.bf16.mxu0 0
    %634 = vmatmul.mubr.bf16.gmra.mrb[0].mxu0 %v599
    %v635 = vpop.f32.mrb[0].mxu0
    %v636 = vadd.f32 0.0, %v635
    %v637 = vpop.f32.mrb[0].mxu0
    %v638 = vpop.f32.mrb[0].mxu0
    %v639 = vpop.f32.mrb[0].mxu0
    %640 = vdwg.mxu0
    %v641 = vadd.f32 %v224, %v293
    %v642 = vadd.f32 %v225, %v342
    %v643 = vadd.f32 %v226, %v391
    %v644 = vadd.f32 %v227, %v440
    %v645 = vadd.f32 %v228, %v489
    %v646 = vadd.f32 %v229, %v538
    %v647 = vadd.f32 %v230, %v587
    %v648 = vadd.f32 %v231, %v636
    %649 = vst [vmem:[#allocation2] sm:$0x1] %v641
    %650 = vst [vmem:[#allocation2 + $0x1] sm:$0x1] %v642
    %651 = vst [vmem:[#allocation2 + $0x2] sm:$0x1] %v643
    %652 = vst [vmem:[#allocation2 + $0x3] sm:$0x1] %v644
    %653 = vst [vmem:[#allocation2 + $0x4] sm:$0x1] %v645
    %654 = vst [vmem:[#allocation2 + $0x5] sm:$0x1] %v646
    %655 = vst [vmem:[#allocation2 + $0x6] sm:$0x1] %v647
    %656 = vst [vmem:[#allocation2 + $0x7] sm:$0x1] %v648
    // Predicated region
    $region46: #{tpu_custom_call.1} parent=1 // pred_check
      %p657 = pneg %p69
    $region47: #{tpu_custom_call.1} parent=1 // pred_check_branch
      %659 = sbr.rel (%p657) target = $region49
    $region48: #{tpu_custom_call.1} parent=1 // pred_region
      %v660 = vcvt.s32.f32 %v86
      %v661 = vmax.f32 %v660, 1.0
      %v662 = vmin.f32 %v661, 8.0
      %v663 = vld [vmem:[#allocation2] sm:$0x1]
      %v664 = vld [vmem:[#allocation2 + $0x1] sm:$0x1]
      %v665 = vld [vmem:[#allocation2 + $0x2] sm:$0x1]
      %v666 = vld [vmem:[#allocation2 + $0x3] sm:$0x1]
      %v667 = vld [vmem:[#allocation2 + $0x4] sm:$0x1]
      %v668 = vld [vmem:[#allocation2 + $0x5] sm:$0x1]
      %v669 = vld [vmem:[#allocation2 + $0x6] sm:$0x1]
      %v670 = vld [vmem:[#allocation2 + $0x7] sm:$0x1]
      %672 = vset.pattern.permute.xlu0 0
      %673 = vperm.xlu0 %672, %v662
      %v674 = vpop.permute.xlu0 %673
      %v675 = vlaneseq
      %v676 = vshrl.u32 %v675, 7
      %v677 = vsub.s32 0, %v676
      %v678 = vrot.slane %v674, %v677
      %v679 = vlaneseq
      %v680 = vshrl.u32 %v679, 7
      %v681 = vsub.s32 1, %v680
      %v682 = vrot.slane %v674, %v681
      %v683 = vlaneseq
      %v684 = vshrl.u32 %v683, 7
      %v685 = vsub.s32 2, %v684
      %v686 = vrot.slane %v674, %v685
      %v687 = vlaneseq
      %v688 = vshrl.u32 %v687, 7
      %v689 = vsub.s32 3, %v688
      %v690 = vrot.slane %v674, %v689
      %v691 = vlaneseq
      %v692 = vshrl.u32 %v691, 7
      %v693 = vsub.s32 4, %v692
      %v694 = vrot.slane %v674, %v693
      %v695 = vlaneseq
      %v696 = vshrl.u32 %v695, 7
      %v697 = vsub.s32 5, %v696
      %v698 = vrot.slane %v674, %v697
      %v699 = vlaneseq
      %v700 = vshrl.u32 %v699, 7
      %v701 = vsub.s32 6, %v700
      %v702 = vrot.slane %v674, %v701
      %v703 = vlaneseq
      %v704 = vshrl.u32 %v703, 7
      %v705 = vsub.s32 7, %v704
      %v706 = vrot.slane %v674, %v705
      %v715 = vrcp.pop %v678
      %v716 = vmul.f32 %v663, %v715
      %v717 = vrcp.pop %v682
      %v718 = vmul.f32 %v664, %v717
      %v719 = vrcp.pop %v686
      %v720 = vmul.f32 %v665, %v719
      %v721 = vrcp.pop %v690
      %v722 = vmul.f32 %v666, %v721
      %v723 = vrcp.pop %v694
      %v724 = vmul.f32 %v667, %v723
      %v725 = vrcp.pop %v698
      %v726 = vmul.f32 %v668, %v725
      %v727 = vrcp.pop %v702
      %v728 = vmul.f32 %v669, %v727
      %v729 = vrcp.pop %v706
      %v730 = vmul.f32 %v670, %v729
      %v731 = vpack.c.bf16 %v716, %v716
      %v732 = vpack.c.bf16 %v718, %v718
      %v733 = vpack.c.bf16 %v720, %v720
      %v734 = vpack.c.bf16 %v722, %v722
      %v735 = vpack.c.bf16 %v724, %v724
      %v736 = vpack.c.bf16 %v726, %v726
      %v737 = vpack.c.bf16 %v728, %v728
      %v738 = vpack.c.bf16 %v730, %v730
      %v739 = vld [vmem:[#allocation6] sm:$0xf]
      %v740 = vld [vmem:[#allocation6 + $0x4] sm:$0xf]
      %v741 = vld [vmem:[#allocation6 + $0x8] sm:$0xf]
      %v742 = vld [vmem:[#allocation6 + $0xc] sm:$0xf]
      %v743 = vld [vmem:[#allocation6 + $0x10] sm:$0xf]
      %v744 = vld [vmem:[#allocation6 + $0x14] sm:$0xf]
      %v745 = vld [vmem:[#allocation6 + $0x18] sm:$0xf]
      %v746 = vld [vmem:[#allocation6 + $0x1c] sm:$0xf]
      %v747 = vld [vmem:[#allocation6 + $0x20] sm:$0xf]
      %v748 = vld [vmem:[#allocation6 + $0x24] sm:$0xf]
      %v749 = vld [vmem:[#allocation6 + $0x28] sm:$0xf]
      %v750 = vld [vmem:[#allocation6 + $0x2c] sm:$0xf]
      %v751 = vld [vmem:[#allocation6 + $0x30] sm:$0xf]
      %v752 = vld [vmem:[#allocation6 + $0x34] sm:$0xf]
      %v753 = vld [vmem:[#allocation6 + $0x38] sm:$0xf]
      %v754 = vld [vmem:[#allocation6 + $0x3c] sm:$0xf]
      %v755 = vld [vmem:[%s3] sm:$0x1]
      %v757 = vlaneseq
      %v758 = vshrl.u32 %v757, 7
      %v759 = vsub.s32 0, %v758
      %v760 = vrot.slane %v755, %v759
      %v770 = vunpack.c.l.b16 %v731
      %v771 = vunpack.c.l.b16 %v732
      %v772 = vunpack.c.l.b16 %v733
      %v773 = vunpack.c.l.b16 %v734
      %v774 = vunpack.c.l.b16 %v735
      %v775 = vunpack.c.l.b16 %v736
      %v776 = vunpack.c.l.b16 %v737
      %v777 = vunpack.c.l.b16 %v738
      %v778 = vrot.slane %v771, 7
      %vm779 = vcmask 1041409
      %v780 = vsel %vm779, %v778, %v770
      %v781 = vrot.slane %v772, 6
      %vm782 = vcmask 1042434
      %v783 = vsel %vm782, %v781, %v780
      %v784 = vrot.slane %v773, 5
      %vm785 = vcmask 1043459
      %v786 = vsel %vm785, %v784, %v783
      %v787 = vrot.slane %v774, 4
      %vm788 = vcmask 1044484
      %v789 = vsel %vm788, %v787, %v786
      %v790 = vrot.slane %v775, 3
      %vm791 = vcmask 1045509
      %v792 = vsel %vm791, %v790, %v789
      %v793 = vrot.slane %v776, 2
      %vm794 = vcmask 1046534
      %v795 = vsel %vm794, %v793, %v792
      %v796 = vrot.slane %v777, 1
      %vm797 = vcmask 1047559
      %v798 = vsel %vm797, %v796, %v795
      %v799 = vpack.c.b16 %v798, %v798
      %v817 = vunpack.c.l.b16 %v739
      %v818 = vunpack.c.l.b16 %v740
      %v819 = vunpack.c.l.b16 %v741
      %v820 = vunpack.c.l.b16 %v742
      %v821 = vunpack.c.l.b16 %v743
      %v822 = vunpack.c.l.b16 %v744
      %v823 = vunpack.c.l.b16 %v745
      %v824 = vunpack.c.l.b16 %v746
      %v825 = vunpack.c.l.b16 %v747
      %v826 = vunpack.c.l.b16 %v748
      %v827 = vunpack.c.l.b16 %v749
      %v828 = vunpack.c.l.b16 %v750
      %v829 = vunpack.c.l.b16 %v751
      %v830 = vunpack.c.l.b16 %v752
      %v831 = vunpack.c.l.b16 %v753
      %v832 = vunpack.c.l.b16 %v754
      %v833 = vpack.c.b16 %v818, %v817
      %v834 = vpack.c.b16 %v820, %v819
      %v835 = vpack.c.b16 %v822, %v821
      %v836 = vpack.c.b16 %v824, %v823
      %v837 = vpack.c.b16 %v826, %v825
      %v838 = vpack.c.b16 %v828, %v827
      %v839 = vpack.c.b16 %v830, %v829
      %v840 = vpack.c.b16 %v832, %v831
      %849 = vmatprep.subr.bf16.mxu0 0
      %850 = vmatpush1.bf16.msra.mxu0 %v833
      %851 = vmatprep.subr.bf16.mxu0 0
      %852 = vmatpush1.bf16.msra.mxu0 %v834
      %853 = vmatprep.subr.bf16.mxu0 0
      %854 = vmatpush1.bf16.msra.mxu0 %v835
      %855 = vmatprep.subr.bf16.mxu0 0
      %856 = vmatpush1.bf16.msra.mxu0 %v836
      %857 = vmatprep.subr.bf16.mxu0 0
      %858 = vmatpush1.bf16.msra.mxu0 %v837
      %859 = vmatprep.subr.bf16.mxu0 0
      %860 = vmatpush1.bf16.msra.mxu0 %v838
      %861 = vmatprep.subr.bf16.mxu0 0
      %862 = vmatpush1.bf16.msra.mxu0 %v839
      %863 = vmatprep.subr.bf16.mxu0 0
      %864 = vmatpush1.bf16.msra.mxu0 %v840
      %865 = vmatprep.subr.bf16.mxu0 0
      %866 = vmatpush1.bf16.msra.mxu0 0
      %867 = vmatprep.subr.bf16.mxu0 0
      %868 = vmatpush1.bf16.msra.mxu0 0
      %869 = vmatprep.subr.bf16.mxu0 0
      %870 = vmatpush1.bf16.msra.mxu0 0
      %871 = vmatprep.subr.bf16.mxu0 0
      %872 = vmatpush1.bf16.msra.mxu0 0
      %873 = vmatprep.subr.bf16.mxu0 0
      %874 = vmatpush1.bf16.msra.mxu0 0
      %875 = vmatprep.subr.bf16.mxu0 0
      %876 = vmatpush1.bf16.msra.mxu0 0
      %877 = vmatprep.subr.bf16.mxu0 0
      %878 = vmatpush1.bf16.msra.mxu0 0
      %879 = vmatprep.subr.bf16.mxu0 0
      %880 = vmatpush1.bf16.msra.mxu0 0
      %881 = vmatprep.mubr.bf16.mxu0 0
      %882 = vmatmul.mubr.bf16.gmra.mrb[0].mxu0 %v799
      %v883 = vpop.f32.mrb[0].mxu0
      %v884 = vadd.f32 %v760, %v883
      %v885 = vpop.f32.mrb[0].mxu0
      %v886 = vpop.f32.mrb[0].mxu0
      %v887 = vpop.f32.mrb[0].mxu0
      %888 = vdwg.mxu0
      %v889 = vtanh.pop %v884
      %v890 = vld [vmem:[%s6] sm:$0xff]
      %v891 = vmul.f32 %v889, %v890
      %v892 = vpack.c.bf16 %v891, %v891
      %v893 = vld [vmem:[#allocation8] sm:$0xf]
      %v894 = vld [vmem:[#allocation8 + $0x4] sm:$0xf]
      %v895 = vld [vmem:[#allocation8 + $0x8] sm:$0xf]
      %v896 = vld [vmem:[#allocation8 + $0xc] sm:$0xf]
      %v897 = vld [vmem:[#allocation8 + $0x10] sm:$0xf]
      %v898 = vld [vmem:[#allocation8 + $0x14] sm:$0xf]
      %v899 = vld [vmem:[#allocation8 + $0x18] sm:$0xf]
      %v900 = vld [vmem:[#allocation8 + $0x1c] sm:$0xf]
      %v901 = vld [vmem:[#allocation8 + $0x20] sm:$0xf]
      %v902 = vld [vmem:[#allocation8 + $0x24] sm:$0xf]
      %v903 = vld [vmem:[#allocation8 + $0x28] sm:$0xf]
      %v904 = vld [vmem:[#allocation8 + $0x2c] sm:$0xf]
      %v905 = vld [vmem:[#allocation8 + $0x30] sm:$0xf]
      %v906 = vld [vmem:[#allocation8 + $0x34] sm:$0xf]
      %v907 = vld [vmem:[#allocation8 + $0x38] sm:$0xf]
      %v908 = vld [vmem:[#allocation8 + $0x3c] sm:$0xf]
      %v909 = vld [vmem:[%s5] sm:$0x1]
      %v911 = vlaneseq
      %v912 = vshrl.u32 %v911, 7
      %v913 = vsub.s32 0, %v912
      %v914 = vrot.slane %v909, %v913
      %v932 = vunpack.c.l.b16 %v893
      %v933 = vunpack.c.l.b16 %v894
      %v934 = vunpack.c.l.b16 %v895
      %v935 = vunpack.c.l.b16 %v896
      %v936 = vunpack.c.l.b16 %v897
      %v937 = vunpack.c.l.b16 %v898
      %v938 = vunpack.c.l.b16 %v899
      %v939 = vunpack.c.l.b16 %v900
      %v940 = vunpack.c.l.b16 %v901
      %v941 = vunpack.c.l.b16 %v902
      %v942 = vunpack.c.l.b16 %v903
      %v943 = vunpack.c.l.b16 %v904
      %v944 = vunpack.c.l.b16 %v905
      %v945 = vunpack.c.l.b16 %v906
      %v946 = vunpack.c.l.b16 %v907
      %v947 = vunpack.c.l.b16 %v908
      %v948 = vpack.c.b16 %v933, %v932
      %v949 = vpack.c.b16 %v935, %v934
      %v950 = vpack.c.b16 %v937, %v936
      %v951 = vpack.c.b16 %v939, %v938
      %v952 = vpack.c.b16 %v941, %v940
      %v953 = vpack.c.b16 %v943, %v942
      %v954 = vpack.c.b16 %v945, %v944
      %v955 = vpack.c.b16 %v947, %v946
      %964 = vmatprep.subr.bf16.mxu0 0
      %965 = vmatpush1.bf16.msra.mxu0 %v948
      %966 = vmatprep.subr.bf16.mxu0 0
      %967 = vmatpush1.bf16.msra.mxu0 %v949
      %968 = vmatprep.subr.bf16.mxu0 0
      %969 = vmatpush1.bf16.msra.mxu0 %v950
      %970 = vmatprep.subr.bf16.mxu0 0
      %971 = vmatpush1.bf16.msra.mxu0 %v951
      %972 = vmatprep.subr.bf16.mxu0 0
      %973 = vmatpush1.bf16.msra.mxu0 %v952
      %974 = vmatprep.subr.bf16.mxu0 0
      %975 = vmatpush1.bf16.msra.mxu0 %v953
      %976 = vmatprep.subr.bf16.mxu0 0
      %977 = vmatpush1.bf16.msra.mxu0 %v954
      %978 = vmatprep.subr.bf16.mxu0 0
      %979 = vmatpush1.bf16.msra.mxu0 %v955
      %980 = vmatprep.subr.bf16.mxu0 0
      %981 = vmatpush1.bf16.msra.mxu0 0
      %982 = vmatprep.subr.bf16.mxu0 0
      %983 = vmatpush1.bf16.msra.mxu0 0
      %984 = vmatprep.subr.bf16.mxu0 0
      %985 = vmatpush1.bf16.msra.mxu0 0
      %986 = vmatprep.subr.bf16.mxu0 0
      %987 = vmatpush1.bf16.msra.mxu0 0
      %988 = vmatprep.subr.bf16.mxu0 0
      %989 = vmatpush1.bf16.msra.mxu0 0
      %990 = vmatprep.subr.bf16.mxu0 0
      %991 = vmatpush1.bf16.msra.mxu0 0
      %992 = vmatprep.subr.bf16.mxu0 0
      %993 = vmatpush1.bf16.msra.mxu0 0
      %994 = vmatprep.subr.bf16.mxu0 0
      %995 = vmatpush1.bf16.msra.mxu0 0
      %996 = vmatprep.mubr.bf16.mxu0 0
      %997 = vmatmul.mubr.bf16.gmra.mrb[0].mxu0 %v892
      %v998 = vpop.f32.mrb[0].mxu0
      %v999 = vadd.f32 %v914, %v998
      %v1000 = vpop.f32.mrb[0].mxu0
      %v1001 = vpop.f32.mrb[0].mxu0
      %v1002 = vpop.f32.mrb[0].mxu0
      %1003 = vdwg.mxu0
      %1004 = vst [vmem:[#allocation9] sm:$0xff] %v999
    $region49: #{tpu_custom_call.1} parent=1 // pred_fallthru
      _
    // Predicated region
    $region50: #{tpu_custom_call.1} parent=1 // pred_check
      _
    $region51: #{tpu_custom_call.1} parent=1 // pred_check_branch
      %1006 = sbr.rel (0) target = $region53
    $region52: #{tpu_custom_call.1} parent=1 // pred_region
      %s1008 = ssub.s32 128, 128
      %1009 = vsyncadd [#allocation5], %s1008
      %s1011 = sshll.u32 [#allocation9], 4
      %s1012 = int_to_ptr.vmem [resolvable:$true] %s1011
      %1014 = dma.vmem_to_hbm [thread:$0]  %s1012, 128, %s7, [#allocation5]
    $region53: #{tpu_custom_call.1} parent=1 // pred_fallthru
      _
    // Predicated region
    $region54: #{tpu_custom_call.1} parent=1 // pred_check
      _
    $region55: #{tpu_custom_call.1} parent=1 // pred_check_branch
      %1016 = sbr.rel (0) target = $region57
    $region56: #{tpu_custom_call.1} parent=1 // pred_region
      %1017 = dma.done [#allocation5], 128
    $region57: #{tpu_custom_call.1} parent=1 // pred_fallthru
      _
    %1018 = vsyncpa [#allocation4], 1
    %1019 = vsyncpa [#allocation7], 1
    %1020 = vsyncpa [#allocation5], 1

</llo_original>
